<compile_context>
chip_gen: v5e
topology: v5e:2x2
jax: 0.10.0
libtpu: 0.0.40
codegen_flags: <defaults>
</compile_context>

<pallas_src>
import functools
import math

import jax
import jax.numpy as jnp
from jax.experimental import pallas as pl
from jax.experimental.pallas import tpu as pltpu


def _round_up(a: int, m: int) -> int:
    return ((a + m - 1) // m) * m


def _cdiv(a: int, b: int) -> int:
    return (a + b - 1) // b


# --------------------------------------------------------------------------- #
# Kernel
# --------------------------------------------------------------------------- #
def classifier_kernel(x_ref, w1t_ref, b1_ref, w2t_ref, b2_ref, o_ref,
                      *, out_features: int, mm_dtype):
    # Per-tile cast of x to the MXU dtype (no-op for the pure f32 path); this
    # happens in VMEM, so no extra HBM pass over x.
    x = x_ref[...].astype(mm_dtype)
    # First linear: h = x @ w1t + b1 (weights pre-transposed to [K, N]; f32 acc).
    h = jnp.dot(x, w1t_ref[...], preferred_element_type=jnp.float32) + b1_ref[...]
    # ReLU on the VPU in f32 (v5e has no bf16 VPU).
    h = jnp.maximum(h, 0.0)
    # Second linear against the 128-lane-padded w2t (MXU-friendly), then keep
    # only the real output columns so the HBM writeback is (tile, out_features).
    out = jnp.dot(h.astype(mm_dtype), w2t_ref[...],
                  preferred_element_type=jnp.float32)
    out = out[:, :out_features] + b2_ref[...]
    o_ref[...] = out.astype(o_ref.dtype)


# --------------------------------------------------------------------------- #
# One-time parameter layout prep (hoisted out of the per-call path)
# --------------------------------------------------------------------------- #
def prepare_classifier_params(w1, b1, w2, b2, *, matmul_dtype=None):
    """w1: [cls_feats, num_feats], b1: [cls_feats],
       w2: [out_features, cls_feats], b2: [out_features].

    matmul_dtype: dtype for the MXU operands (e.g. jnp.bfloat16).  Biases,
    accumulation and ReLU stay f32; default keeps everything f32 (matches the
    PyTorch module exactly).
    """
    cls_feats, num_feats = w1.shape
    out_features = w2.shape[0]
    mm_dtype = (jnp.dtype(matmul_dtype) if matmul_dtype is not None
                else jnp.dtype(w1.dtype))

    # Pre-transpose weights so the kernel sees plain [M,K] @ [K,N].
    w1t = jnp.asarray(w1, mm_dtype).T                     # [num_feats, cls_feats]
    w2t = jnp.asarray(w2, mm_dtype).T                     # [cls_feats, out_features]

    # Lane-pad only the MXU operand (not the output) to 128 lanes.
    n2 = _round_up(out_features, 128)
    if n2 != out_features:
        w2t = jnp.pad(w2t, ((0, 0), (0, n2 - out_features)))

    b1_2d = jnp.asarray(b1, jnp.float32).reshape(1, cls_feats)
    b2_2d = jnp.asarray(b2, jnp.float32).reshape(1, out_features)

    return dict(w1t=w1t, b1=b1_2d, w2t=w2t, b2=b2_2d,
                num_feats=num_feats, cls_feats=cls_feats,
                out_features=out_features, n2=n2, mm_dtype=mm_dtype)


# --------------------------------------------------------------------------- #
# Tile selection: big tiles, even step count (>= 2) for the v7x megacore.
# --------------------------------------------------------------------------- #
def _choose_tile(batch: int, batch_tile: int, sublane: int = 8) -> int:
    batch_tile = max(sublane, (int(batch_tile) // sublane) * sublane)
    if batch <= sublane:
        return batch                        # single block, first dim == full dim
    steps = max(2, _cdiv(batch, batch_tile))  # >= 2 steps to feed both v7x TCs
    if steps % 2:
        steps += 1                          # even split across the two cores
    tile = _round_up(_cdiv(batch, steps), sublane)
    return min(tile, batch_tile)


# --------------------------------------------------------------------------- #
# Forward: a single pallas_call on pre-laid-out params.
# --------------------------------------------------------------------------- #
def classifier_forward(x, params, *, batch_tile=2048):
    B, num_feats = x.shape
    assert num_feats == params["num_feats"]
    cls_feats = params["cls_feats"]
    out_features = params["out_features"]
    n2 = params["n2"]
    mm_dtype = params["mm_dtype"]
    out_dtype = x.dtype

    tile = _choose_tile(B, batch_tile)
    grid = (_cdiv(B, tile),)

    kernel = functools.partial(classifier_kernel,
                               out_features=out_features, mm_dtype=mm_dtype)

    flops = 2 * B * (num_feats * cls_feats + cls_feats * n2)
    bytes_accessed = (B * num_feats * x.dtype.itemsize
                      + params["w1t"].size * params["w1t"].dtype.itemsize
                      + params["w2t"].size * params["w2t"].dtype.itemsize
                      + params["b1"].size * 4 + params["b2"].size * 4
                      + B * out_features * jnp.dtype(out_dtype).itemsize)

    return pl.pallas_call(
        kernel,
        out_shape=jax.ShapeDtypeStruct((B, out_features), out_dtype),
        grid_spec=pltpu.PrefetchScalarGridSpec(
            num_scalar_prefetch=0,
            grid=grid,
            in_specs=[
                pl.BlockSpec((tile, num_feats), lambda i: (i, 0)),       # x tile (ragged last block masked)
                pl.BlockSpec((num_feats, cls_feats), lambda i: (0, 0)),  # w1t (full)
                pl.BlockSpec((1, cls_feats), lambda i: (0, 0)),          # b1 (full)
                pl.BlockSpec((cls_feats, n2), lambda i: (0, 0)),         # w2t (full, lane-padded MXU operand)
                pl.BlockSpec((1, out_features), lambda i: (0, 0)),       # b2 (full, unpadded)
            ],
            out_specs=pl.BlockSpec((tile, out_features), lambda i: (i, 0)),
        ),
        compiler_params=pltpu.CompilerParams(
            dimension_semantics=("parallel",)),
        cost_estimate=pl.CostEstimate(
            flops=flops, transcendentals=0, bytes_accessed=bytes_accessed),
    )(x, params["w1t"], params["b1"], params["w2t"], params["b2"])


# --------------------------------------------------------------------------- #
# Init + reference
# --------------------------------------------------------------------------- #
def kaiming_normal(key, shape):
    # Matches nn.init.kaiming_normal_ defaults: fan_in mode, gain = sqrt(2).
    fan_in = shape[1]
    std = math.sqrt(2.0) / math.sqrt(fan_in)
    return jax.random.normal(key, shape, dtype=jnp.float32) * std


def _ref_forward_f32(x, w1, b1, w2, b2):
    h = jnp.maximum(x @ w1.T + b1, 0.0)
    return h @ w2.T + b2


def _ref_forward_mixed(x, w1, b1, w2, b2, mm_dtype):
    # Plain-JAX reference with the same mixed-precision casting as the kernel.
    h = jnp.dot(x.astype(mm_dtype), w1.astype(mm_dtype).T,
                preferred_element_type=jnp.float32) + b1
    h = jnp.maximum(h, 0.0)
    out = jnp.dot(h.astype(mm_dtype), w2.astype(mm_dtype).T,
                  preferred_element_type=jnp.float32) + b2
    return out.astype(x.dtype)


if __name__ == "__main__":
    # Shapes consistent with the module:
    #   num_feats = layer_2_feats * 2 = 64, cls_feats = 128, out_features = 2
    num_feats, cls_feats, out_features = 64, 128, 2

    key = jax.random.PRNGKey(0)
    kw1, kw2, kx1, kx2 = jax.random.split(key, 4)

    w1 = kaiming_normal(kw1, (cls_feats, num_feats))
    b1 = jnp.zeros((cls_feats,), dtype=jnp.float32)
    w2 = kaiming_normal(kw2, (out_features, cls_feats))
    b2 = jnp.zeros((out_features,), dtype=jnp.float32)

    # One-time param prep (done once, outside the per-call path).
    params_f32 = prepare_classifier_params(w1, b1, w2, b2)
    params_bf16 = prepare_classifier_params(w1, b1, w2, b2,
                                            matmul_dtype=jnp.bfloat16)

    # ---- Check 1: tiny batch, pure f32 path (tight tolerance) ---------------
    x1 = jax.random.normal(kx1, (8, num_feats), dtype=jnp.float32)
    out1 = jax.block_until_ready(classifier_forward(x1, params_f32))
    ref1 = _ref_forward_f32(x1, w1, b1, w2, b2)
    assert out1.shape == (8, out_features)
    assert jnp.allclose(out1, ref1, atol=1e-4, rtol=1e-4)

    # ---- Check 2: ragged batch, multiple (even) grid steps, f32 -------------
    x2 = jax.random.normal(kx2, (300, num_feats), dtype=jnp.float32)
    out2 = jax.block_until_ready(classifier_forward(x2, params_f32,
                                                    batch_tile=128))
    ref2 = _ref_forward_f32(x2, w1, b1, w2, b2)
    assert out2.shape == (300, out_features)
    assert jnp.allclose(out2, ref2, atol=1e-4, rtol=1e-4)

    # ---- Check 3: bf16 MXU inputs (opt-in), ragged batch ---------------------
    out3 = jax.block_until_ready(classifier_forward(x2, params_bf16,
                                                    batch_tile=128))
    ref3 = _ref_forward_mixed(x2, w1, b1, w2, b2, jnp.bfloat16)
    assert out3.shape == (300, out_features)
    assert jnp.allclose(out3, ref3, atol=2e-2, rtol=2e-2)

    print("KERNEL_OK")
</pallas_src>

<mosaic_0001>
module attributes {stable_mosaic.version = 11 : i64} {
  func.func @classifier_kernel(%arg0: i32, %arg1: memref<8x64xf32, #tpu.memory_space<vmem>>, %arg2: memref<64x128xf32, #tpu.memory_space<vmem>>, %arg3: memref<1x128xf32, #tpu.memory_space<vmem>>, %arg4: memref<128x128xf32, #tpu.memory_space<vmem>>, %arg5: memref<1x2xf32, #tpu.memory_space<vmem>>, %arg6: memref<8x2xf32, #tpu.memory_space<vmem>>) attributes {dimension_semantics = [#tpu.dimension_semantics<parallel>], iteration_bounds = array<i64: 1>, scalar_prefetch = 0 : i64, scratch_operands = 0 : i64, tpu.core_type = #tpu.core_type<tc>, window_params = [{transform_indices = @transform_0, window_bounds = array<i64: 8, 64>}, {pipeline_mode = #tpu.pipeline_mode<synchronous>, transform_indices = @transform_1, window_bounds = array<i64: 64, 128>}, {pipeline_mode = #tpu.pipeline_mode<synchronous>, transform_indices = @transform_2, window_bounds = array<i64: 1, 128>}, {pipeline_mode = #tpu.pipeline_mode<synchronous>, transform_indices = @transform_3, window_bounds = array<i64: 128, 128>}, {pipeline_mode = #tpu.pipeline_mode<synchronous>, transform_indices = @transform_4, window_bounds = array<i64: 1, 2>}, {transform_indices = @transform_5, window_bounds = array<i64: 8, 2>}]} {
    %c0 = arith.constant 0 : index
    %c0_0 = arith.constant 0 : index
    %0 = vector.load %arg1[%c0, %c0_0] : memref<8x64xf32, #tpu.memory_space<vmem>>, vector<8x64xf32>
    %c0_1 = arith.constant 0 : index
    %c0_2 = arith.constant 0 : index
    %1 = vector.load %arg2[%c0_1, %c0_2] : memref<64x128xf32, #tpu.memory_space<vmem>>, vector<64x128xf32>
    %cst = arith.constant dense<0.000000e+00> : vector<8x128xf32>
    %2 = tpu.matmul %0, %1, %cst {dimension_numbers = #tpu.dot_dimension_numbers<[1], [0], [0], [1], [0, 0, 1, 1], [], []>} : vector<8x64xf32>, vector<64x128xf32>, vector<8x128xf32> -> vector<8x128xf32>
    %c0_3 = arith.constant 0 : index
    %c0_4 = arith.constant 0 : index
    %3 = vector.load %arg3[%c0_3, %c0_4] : memref<1x128xf32, #tpu.memory_space<vmem>>, vector<1x128xf32>
    %4 = vector.broadcast %3 : vector<1x128xf32> to vector<8x128xf32>
    %5 = arith.addf %2, %4 : vector<8x128xf32>
    %cst_5 = arith.constant 0.000000e+00 : f32
    %6 = vector.broadcast %cst_5 : f32 to vector<8x128xf32>
    %7 = arith.maximumf %5, %6 : vector<8x128xf32>
    %c0_6 = arith.constant 0 : index
    %c0_7 = arith.constant 0 : index
    %8 = vector.load %arg4[%c0_6, %c0_7] : memref<128x128xf32, #tpu.memory_space<vmem>>, vector<128x128xf32>
    %cst_8 = arith.constant dense<0.000000e+00> : vector<8x128xf32>
    %9 = tpu.matmul %7, %8, %cst_8 {dimension_numbers = #tpu.dot_dimension_numbers<[1], [0], [0], [1], [0, 0, 1, 1], [], []>} : vector<8x128xf32>, vector<128x128xf32>, vector<8x128xf32> -> vector<8x128xf32>
    %10 = vector.extract_strided_slice %9 {offsets = [0, 0], sizes = [8, 2], strides = [1, 1]} : vector<8x128xf32> to vector<8x2xf32>
    %c0_9 = arith.constant 0 : index
    %c0_10 = arith.constant 0 : index
    %11 = vector.load %arg5[%c0_9, %c0_10] : memref<1x2xf32, #tpu.memory_space<vmem>>, vector<1x2xf32>
    %12 = vector.broadcast %11 : vector<1x2xf32> to vector<8x2xf32>
    %13 = arith.addf %10, %12 : vector<8x2xf32>
    %c0_11 = arith.constant 0 : index
    %c0_12 = arith.constant 0 : index
    %14 = vector.load %arg6[%c0_11, %c0_12] : memref<8x2xf32, #tpu.memory_space<vmem>>, vector<8x2xf32>
    tpu.vector_store %arg6[%c0_11, %c0_12], %13 {strides = array<i32>} : memref<8x2xf32, #tpu.memory_space<vmem>>, vector<8x2xf32>,
    return
  }
  func.func @transform_0(%arg0: i32) -> (i32, i32) {
    %c0_i32 = arith.constant 0 : i32
    %c0_i32_0 = arith.constant 0 : i32
    return %arg0, %c0_i32 : i32, i32
  }
  func.func @transform_1(%arg0: i32) -> (i32, i32) {
    %c0_i32 = arith.constant 0 : i32
    %c0_i32_0 = arith.constant 0 : i32
    %c0_i32_1 = arith.constant 0 : i32
    return %c0_i32, %c0_i32_0 : i32, i32
  }
  func.func @transform_2(%arg0: i32) -> (i32, i32) {
    %c0_i32 = arith.constant 0 : i32
    %c0_i32_0 = arith.constant 0 : i32
    %c0_i32_1 = arith.constant 0 : i32
    return %c0_i32, %c0_i32_0 : i32, i32
  }
  func.func @transform_3(%arg0: i32) -> (i32, i32) {
    %c0_i32 = arith.constant 0 : i32
    %c0_i32_0 = arith.constant 0 : i32
    %c0_i32_1 = arith.constant 0 : i32
    return %c0_i32, %c0_i32_0 : i32, i32
  }
  func.func @transform_4(%arg0: i32) -> (i32, i32) {
    %c0_i32 = arith.constant 0 : i32
    %c0_i32_0 = arith.constant 0 : i32
    %c0_i32_1 = arith.constant 0 : i32
    return %c0_i32, %c0_i32_0 : i32, i32
  }
  func.func @transform_5(%arg0: i32) -> (i32, i32) {
    %c0_i32 = arith.constant 0 : i32
    %c0_i32_0 = arith.constant 0 : i32
    return %arg0, %c0_i32 : i32, i32
  }
}

</mosaic_0001>

<llo_original>
// kernel: tpu_custom_call.1
$region0: #{tpu_custom_call.1}
  #allocation0 [shape = 'u32[]', space=smem, size = 0x4, offset = 0x4, fixed_abs, tag = 'smem constant byte address 0x4 - core index']
  #allocation1 [shape = 'u32[72,128]{1,0:T(1,128)}', space=vmem, size = 0x9000, scoped, tag = 'internal scratch']
  %s0 = inlined_call_operand.hbm [shape: f32[8,64], index: 0, kind: input, shape index: {}]
  %s1 = inlined_call_operand.hbm [shape: f32[64,128], index: 1, kind: input, shape index: {}]
  %s2 = inlined_call_operand.vmem [shape: f32[1,128], index: 2, kind: input, shape index: {}]
  %s3 = inlined_call_operand.hbm [shape: f32[128,128], index: 3, kind: input, shape index: {}]
  %s4 = inlined_call_operand.vmem [shape: f32[1,2], index: 4, kind: input, shape index: {}]
  %s5 = inlined_call_operand.vmem [shape: f32[8,2], index: 5, kind: output, shape index: {}]
  %s6 = sld [smem:[#allocation0]]
  $region42: #{tpu_custom_call.1} parent=0
    _
  %s8 = ssub.s32 1, %s6
  %s9 = scalar_select 0, %s8, %s6
  $region1: #{tpu_custom_call.1} parent=0
    #allocation2 [shape = 'u8[4096]{0}', space=vmem, size = 0x1000, scoped, tag = 'input window, operand 0, single buffered']
    #allocation3 [shape = 's32[1]{0}', space=sflag, size = 0x4, scoped, tag = 'scoped memory for tpu_custom_call.1']
    #allocation4 [shape = 'u8[32768]{0}', space=vmem, size = 0x8000, scoped, tag = 'input window, operand 1, single buffered']
    #allocation5 [shape = 's32[1]{0}', space=sflag, size = 0x4, scoped, tag = 'scoped memory for tpu_custom_call.1']
    #allocation6 [shape = 'u8[65536]{0}', space=vmem, size = 0x10000, scoped, tag = 'input window, operand 3, single buffered']
    %10 = vsyncpa [#allocation3], 0
    %11 = vsyncpa [#allocation5], 0
    // Predicated region
    $region2: #{tpu_custom_call.1} parent=1 // pred_check
      _
    $region3: #{tpu_custom_call.1} parent=1 // pred_check_branch
      %13 = sbr.rel (0) target = $region5
    $region4: #{tpu_custom_call.1} parent=1 // pred_region
      %15 = vsyncadd [#allocation3], 0
      %s17 = sshll.u32 %s0, 4
      %s18 = int_to_ptr.hbm [resolvable:$true] %s17
      %s19 = sshll.u32 [#allocation2], 4
      %s20 = int_to_ptr.vmem [resolvable:$true] %s19
      %22 = dma.hbm_to_vmem [thread:$0]  %s18, 128, %s20, [#allocation3]
    $region5: #{tpu_custom_call.1} parent=1 // pred_fallthru
      _
    // Predicated region
    $region6: #{tpu_custom_call.1} parent=1 // pred_check
      _
    $region7: #{tpu_custom_call.1} parent=1 // pred_check_branch
      %24 = sbr.rel (0) target = $region9
    $region8: #{tpu_custom_call.1} parent=1 // pred_region
      %26 = vsyncadd [#allocation5], 0
      %s27 = sshll.u32 %s1, 4
      %s28 = int_to_ptr.hbm [resolvable:$true] %s27
      %s29 = sshll.u32 [#allocation4], 4
      %s30 = int_to_ptr.vmem [resolvable:$true] %s29
      %35 = dma.hbm_to_vmem [thread:$0]  %s28, 1024, %s30, [#allocation5], 128, 128, 8
    $region9: #{tpu_custom_call.1} parent=1 // pred_fallthru
      _
    // Predicated region
    $region10: #{tpu_custom_call.1} parent=1 // pred_check
      _
    $region11: #{tpu_custom_call.1} parent=1 // pred_check_branch
      %37 = sbr.rel (0) target = $region13
    $region12: #{tpu_custom_call.1} parent=1 // pred_region
      _
    $region13: #{tpu_custom_call.1} parent=1 // pred_fallthru
      _
    // Predicated region
    $region14: #{tpu_custom_call.1} parent=1 // pred_check
      _
    $region15: #{tpu_custom_call.1} parent=1 // pred_check_branch
      %39 = sbr.rel (0) target = $region17
    $region16: #{tpu_custom_call.1} parent=1 // pred_region
      %41 = vsyncadd [#allocation5], 0
      %s42 = sshll.u32 %s3, 4
      %s43 = int_to_ptr.hbm [resolvable:$true] %s42
      %s44 = sshll.u32 [#allocation6], 4
      %s45 = int_to_ptr.vmem [resolvable:$true] %s44
      %50 = dma.hbm_to_vmem [thread:$0]  %s43, 2048, %s45, [#allocation5], 128, 128, 8
    $region17: #{tpu_custom_call.1} parent=1 // pred_fallthru
      _
    // Predicated region
    $region18: #{tpu_custom_call.1} parent=1 // pred_check
      _
    $region19: #{tpu_custom_call.1} parent=1 // pred_check_branch
      %52 = sbr.rel (0) target = $region21
    $region20: #{tpu_custom_call.1} parent=1 // pred_region
      _
    $region21: #{tpu_custom_call.1} parent=1 // pred_fallthru
      _
    // Predicated region
    $region22: #{tpu_custom_call.1} parent=1 // pred_check
      _
    $region23: #{tpu_custom_call.1} parent=1 // pred_check_branch
      %54 = sbr.rel (0) target = $region25
    $region24: #{tpu_custom_call.1} parent=1 // pred_region
      %56 = dma.done [#allocation3], 128
    $region25: #{tpu_custom_call.1} parent=1 // pred_fallthru
      _
    // Predicated region
    $region26: #{tpu_custom_call.1} parent=1 // pred_check
      _
    $region27: #{tpu_custom_call.1} parent=1 // pred_check_branch
      %58 = sbr.rel (0) target = $region29
    $region28: #{tpu_custom_call.1} parent=1 // pred_region
      %60 = dma.done [#allocation5], 1024
    $region29: #{tpu_custom_call.1} parent=1 // pred_fallthru
      _
    // Predicated region
    $region30: #{tpu_custom_call.1} parent=1 // pred_check
      _
    $region31: #{tpu_custom_call.1} parent=1 // pred_check_branch
      %62 = sbr.rel (0) target = $region33
    $region32: #{tpu_custom_call.1} parent=1 // pred_region
      %64 = dma.done [#allocation5], 2048
    $region33: #{tpu_custom_call.1} parent=1 // pred_fallthru
      _
    %v65 = vld [vmem:[#allocation2] sm:$0xff]
    %v66 = vld [vmem:[#allocation4] sm:$0xff]
    %v67 = vld [vmem:[#allocation4 + $0x8] sm:$0xff]
    %v68 = vld [vmem:[#allocation4 + $0x10] sm:$0xff]
    %v69 = vld [vmem:[#allocation4 + $0x18] sm:$0xff]
    %v70 = vld [vmem:[#allocation4 + $0x20] sm:$0xff]
    %v71 = vld [vmem:[#allocation4 + $0x28] sm:$0xff]
    %v72 = vld [vmem:[#allocation4 + $0x30] sm:$0xff]
    %v73 = vld [vmem:[#allocation4 + $0x38] sm:$0xff]
    %v74 = vld [vmem:[%s2] sm:$0x1]
    %v76 = vperm.slane %v74, 0
    %vm78 = vcmask 523264
    %v80 = vsel %vm78, %v65, 0
    %82 = vmatpush.msra.mxu0 0.0
    %83 = vmatpush.msra.mxu0 0.0
    %84 = vmatpush.msra.mxu0 0.0
    %85 = vmatpush.msra.mxu0 0.0
    %86 = vmatpush.msra.mxu0 0.0
    %87 = vmatpush.msra.mxu0 0.0
    %88 = vmatpush.msra.mxu0 0.0
    %89 = vmatpush.msra.mxu0 0.0
    %90 = vmatpush.msra.mxu0 %v73
    %91 = vmatpush.msra.mxu0 %v72
    %92 = vmatpush.msra.mxu0 %v71
    %93 = vmatpush.msra.mxu0 %v70
    %94 = vmatpush.msra.mxu0 %v69
    %95 = vmatpush.msra.mxu0 %v68
    %96 = vmatpush.msra.mxu0 %v67
    %97 = vmatpush.msra.mxu0 %v66
    %98 = vmatmul.f32.gmra.mxu0 %v80
    %v99 = vpop.f32.mrf.mxu0
    %v100 = vadd.f32 %v76, %v99
    %101 = vdwg.mxu0
    %v102 = vmax.f32 %v100, 0.0
    %v103 = vld [vmem:[#allocation6] sm:$0xff]
    %v104 = vld [vmem:[#allocation6 + $0x8] sm:$0xff]
    %v105 = vld [vmem:[#allocation6 + $0x10] sm:$0xff]
    %v106 = vld [vmem:[#allocation6 + $0x18] sm:$0xff]
    %v107 = vld [vmem:[#allocation6 + $0x20] sm:$0xff]
    %v108 = vld [vmem:[#allocation6 + $0x28] sm:$0xff]
    %v109 = vld [vmem:[#allocation6 + $0x30] sm:$0xff]
    %v110 = vld [vmem:[#allocation6 + $0x38] sm:$0xff]
    %v111 = vld [vmem:[#allocation6 + $0x40] sm:$0xff]
    %v112 = vld [vmem:[#allocation6 + $0x48] sm:$0xff]
    %v113 = vld [vmem:[#allocation6 + $0x50] sm:$0xff]
    %v114 = vld [vmem:[#allocation6 + $0x58] sm:$0xff]
    %v115 = vld [vmem:[#allocation6 + $0x60] sm:$0xff]
    %v116 = vld [vmem:[#allocation6 + $0x68] sm:$0xff]
    %v117 = vld [vmem:[#allocation6 + $0x70] sm:$0xff]
    %v118 = vld [vmem:[#allocation6 + $0x78] sm:$0xff]
    %119 = vmatpush.msra.mxu0 %v118
    %120 = vmatpush.msra.mxu0 %v117
    %121 = vmatpush.msra.mxu0 %v116
    %122 = vmatpush.msra.mxu0 %v115
    %123 = vmatpush.msra.mxu0 %v114
    %124 = vmatpush.msra.mxu0 %v113
    %125 = vmatpush.msra.mxu0 %v112
    %126 = vmatpush.msra.mxu0 %v111
    %127 = vmatpush.msra.mxu0 %v110
    %128 = vmatpush.msra.mxu0 %v109
    %129 = vmatpush.msra.mxu0 %v108
    %130 = vmatpush.msra.mxu0 %v107
    %131 = vmatpush.msra.mxu0 %v106
    %132 = vmatpush.msra.mxu0 %v105
    %133 = vmatpush.msra.mxu0 %v104
    %134 = vmatpush.msra.mxu0 %v103
    %135 = vmatmul.f32.gmra.mxu0 %v102
    %v136 = vpop.f32.mrf.mxu0
    %v137 = vadd.f32 0.0, %v136
    %138 = vdwg.mxu0
    %v139 = vld [vmem:[%s4] sm:$0x1]
    %v141 = vperm.slane %v139, 0
    %v143 = vadd.f32 %v137, %v141
    %vm144 = vcmask 15360
    %145 = vst.msk [vmem:[%s5] sm:$0xff] %vm144, %v143
    // Predicated region
    $region34: #{tpu_custom_call.1} parent=1 // pred_check
      _
    $region35: #{tpu_custom_call.1} parent=1 // pred_check_branch
      %147 = sbr.rel (0) target = $region37
    $region36: #{tpu_custom_call.1} parent=1 // pred_region
      _
    $region37: #{tpu_custom_call.1} parent=1 // pred_fallthru
      _
    // Predicated region
    $region38: #{tpu_custom_call.1} parent=1 // pred_check
      _
    $region39: #{tpu_custom_call.1} parent=1 // pred_check_branch
      %149 = sbr.rel (0) target = $region41
    $region40: #{tpu_custom_call.1} parent=1 // pred_region
      _
    $region41: #{tpu_custom_call.1} parent=1 // pred_fallthru
      _
    %150 = vsyncpa [#allocation3], 1
    %151 = vsyncpa [#allocation5], 1

</llo_original>
